<compile_context>
chip_gen: v5e
topology: v5e:2x2
jax: 0.10.0
libtpu: 0.0.40
codegen_flags: <defaults>
</compile_context>

<pallas_src>
import functools

import jax
import jax.numpy as jnp
from jax.experimental import pallas as pl
from jax.experimental.pallas import tpu as pltpu


_VMEM_LIMIT = 48 * 1024 * 1024  # well above actual use, below v7x physical VMEM


# ----------------------------------------------------------------------------
# Pallas kernel: fused direct conv (k=1 or k=3), optionally two activation
# sources (fused skip concat).  grid = (Cout tiles, batch); batch innermost so
# the weight block is fetched once per Cout tile and reused across images.
# ----------------------------------------------------------------------------
def _conv_kernel(*args, n_src, offs, M, relu):
    x_refs = args[:n_src]
    w_ref = args[n_src]
    b_ref = args[n_src + 1]
    o_ref = args[n_src + 2]

    acc = None
    c0 = 0
    for x_ref in x_refs:
        cs = x_ref.shape[-1]
        for t, off in enumerate(offs):
            patch = x_ref[0, off:off + M, :]                  # (M, cs) bf16
            d = jnp.dot(patch, w_ref[t, c0:c0 + cs, :],
                        preferred_element_type=jnp.float32)
            acc = d if acc is None else acc + d
        c0 += cs

    out = acc + b_ref[...]
    if relu:
        out = jnp.maximum(out, 0.0)
    o_ref[0] = out.astype(o_ref.dtype)


def conv2d(xs, p, *, ksize, relu, out_dtype=jnp.bfloat16, pad_cout_to=None):
    """nn.Conv2d(Cin, Cout, ksize, padding=ksize//2) [+ ReLU], NHWC bf16.

    xs: tuple of NHWC inputs whose channels are stacked (fused torch.cat).
    p["w"]: (ksize*ksize, Cin_total, Cout) bf16, tap = dy*ksize+dx.
    p["b"]: (1, Cout) f32.
    """
    if not isinstance(xs, (tuple, list)):
        xs = (xs,)
    xs = tuple(xs)
    N, H, W, _ = xs[0].shape
    w, b = p["w"], p["b"]
    Cout = int(w.shape[-1])

    # Lane-dense padding of a tiny Cout (the final 1x1 conv): pad to 128 and
    # slice back in the wrapper so the kernel stores are not 4-wide masked.
    Cout_p = Cout
    if pad_cout_to is not None and Cout < pad_cout_to:
        Cout_p = pad_cout_to
        w = jnp.pad(w, ((0, 0), (0, 0), (0, Cout_p - Cout)))
        b = jnp.pad(b, ((0, 0), (0, Cout_p - Cout)))

    # Channel padding to a multiple of 8 (only the Cin=3 stem conv).
    cs = [int(x.shape[-1]) for x in xs]
    if any(c % 8 for c in cs):
        assert len(xs) == 1
        pad_c = (-cs[0]) % 8
        xs = (jnp.pad(xs[0], ((0, 0), (0, 0), (0, 0), (0, pad_c))),)
        w = jnp.pad(w, ((0, 0), (0, pad_c), (0, 0)))
        cs = [cs[0] + pad_c]
    assert int(w.shape[1]) == sum(cs), (w.shape, cs)

    # Flatten the (padded) image so every tap is one contiguous row slice of
    # the flattened activation: out[q] += x_flat[q + dy*Wp + dx] @ W[dy,dx].
    if ksize == 3:
        Wp = W + 2
        offs = tuple(dy * Wp + dx for dy in range(3) for dx in range(3))
        M = H * Wp                                   # includes 2 garbage cols/row
        flat = []
        for x in xs:
            xp = jnp.pad(x, ((0, 0), (1, 1), (1, 1), (0, 0)))
            xf = xp.reshape(N, (H + 2) * Wp, x.shape[-1])
            flat.append(jnp.pad(xf, ((0, 0), (0, 8), (0, 0))))
    else:  # ksize == 1
        Wp = W
        offs = (0,)
        M = H * W
        flat = [x.reshape(N, M, x.shape[-1]) for x in xs]

    co_blk = min(Cout_p, 256)
    assert Cout_p % co_blk == 0
    n_src = len(flat)
    kernel = functools.partial(_conv_kernel, n_src=n_src, offs=offs, M=M, relu=relu)

    in_specs = [pl.BlockSpec((1, int(f.shape[1]), int(f.shape[2])),
                             lambda co, n: (n, 0, 0)) for f in flat]
    in_specs += [
        pl.BlockSpec((len(offs), sum(cs), co_blk), lambda co, n: (0, 0, co)),
        pl.BlockSpec((1, co_blk), lambda co, n: (0, co)),
    ]

    out = pl.pallas_call(
        kernel,
        out_shape=jax.ShapeDtypeStruct((N, M, Cout_p), out_dtype),
        grid_spec=pltpu.PrefetchScalarGridSpec(
            num_scalar_prefetch=0,
            grid=(Cout_p // co_blk, N),
            in_specs=in_specs,
            out_specs=pl.BlockSpec((1, M, co_blk), lambda co, n: (n, 0, co)),
        ),
        compiler_params=pltpu.CompilerParams(
            dimension_semantics=("parallel", "parallel"),
            vmem_limit_bytes=_VMEM_LIMIT,
        ),
    )(*flat, w, b)

    out = out.reshape(N, H, Wp, Cout_p)
    if Wp != W:
        out = out[:, :, :W, :]
    if Cout_p != Cout:
        out = out[..., :Cout]
    return out


# ----------------------------------------------------------------------------
# Pallas kernel: polyphase ConvTranspose2d(k=3, stride=2, padding=1, out_pad=1)
#   ee[m,l] = x[m,l]W11
#   eo[m,l] = x[m,l]W12 + x[m,l+1]W10
#   oe[m,l] = x[m,l]W21 + x[m+1,l]W01
#   oo[m,l] = x[m,l]W22 + x[m,l+1]W20 + x[m+1,l]W02 + x[m+1,l+1]W00
# over the undilated input, zero-padded by one row/col at the bottom/right and
# flattened so each neighbour is a contiguous row slice (offsets 0/1/Wq/Wq+1).
# ----------------------------------------------------------------------------
def _convt_kernel(x_ref, w_ref, b_ref, o_ee, o_eo, o_oe, o_oo, *, M, Wq, relu):
    def tap(off, kh, kw):
        patch = x_ref[0, off:off + M, :]
        return jnp.dot(patch, w_ref[kh * 3 + kw],
                       preferred_element_type=jnp.float32)

    ee = tap(0, 1, 1)
    eo = tap(0, 1, 2) + tap(1, 1, 0)
    oe = tap(0, 2, 1) + tap(Wq, 0, 1)
    oo = tap(0, 2, 2) + tap(1, 2, 0) + tap(Wq, 0, 2) + tap(Wq + 1, 0, 0)

    bias = b_ref[...]
    for o_ref, acc in ((o_ee, ee), (o_eo, eo), (o_oe, oe), (o_oo, oo)):
        v = acc + bias
        if relu:
            v = jnp.maximum(v, 0.0)
        o_ref[0] = v.astype(o_ref.dtype)


def conv_transpose_2x(x, p, *, relu=True, out_dtype=jnp.bfloat16):
    """nn.ConvTranspose2d(Cin, Cout, 3, stride=2, padding=1, output_padding=1) [+ReLU]."""
    N, H, W, Cin = x.shape
    w, b = p["w"], p["b"]                       # w: (9, Cin, Cout), tap = kh*3+kw
    Cout = int(w.shape[-1])
    Wq = W + 1
    M = H * Wq                                  # one garbage col per row

    xp = jnp.pad(x, ((0, 0), (0, 1), (0, 1), (0, 0)))
    xf = jnp.pad(xp.reshape(N, (H + 1) * Wq, Cin), ((0, 0), (0, 8), (0, 0)))

    co_blk = min(Cout, 256)
    kernel = functools.partial(_convt_kernel, M=M, Wq=Wq, relu=relu)
    phase_shape = jax.ShapeDtypeStruct((N, M, Cout), out_dtype)
    phase_spec = pl.BlockSpec((1, M, co_blk), lambda co, n: (n, 0, co))

    ee, eo, oe, oo = pl.pallas_call(
        kernel,
        out_shape=(phase_shape,) * 4,
        grid_spec=pltpu.PrefetchScalarGridSpec(
            num_scalar_prefetch=0,
            grid=(Cout // co_blk, N),
            in_specs=[
                pl.BlockSpec((1, int(xf.shape[1]), Cin), lambda co, n: (n, 0, 0)),
                pl.BlockSpec((9, Cin, co_blk), lambda co, n: (0, 0, co)),
                pl.BlockSpec((1, co_blk), lambda co, n: (0, co)),
            ],
            out_specs=(phase_spec,) * 4,
        ),
        compiler_params=pltpu.CompilerParams(
            dimension_semantics=("parallel", "parallel"),
            vmem_limit_bytes=_VMEM_LIMIT,
        ),
    )(xf, w, b)

    # Interleave parity phases -> (N, 2H, 2W, Cout).
    # TODO(synk): fuse this interleave into the consumer conv (parity-aware
    # index_map) to save one HBM pass over the upsampled activation.
    ph = jnp.stack((ee, eo, oe, oo), axis=2)            # (N, M, 4, C)
    ph = ph.reshape(N, H, Wq, 2, 2, Cout)[:, :, :W]     # (N, H, W, 2, 2, C)
    ph = ph.transpose(0, 1, 3, 2, 4, 5)
    return ph.reshape(N, 2 * H, 2 * W, Cout)


# ----------------------------------------------------------------------------
# Pallas kernel: 2x2 max pool, one whole image per grid step.
# ----------------------------------------------------------------------------
def _maxpool_kernel(x_ref, o_ref):
    C = o_ref.shape[-1]
    m = jnp.maximum(x_ref[0, :, 0], x_ref[0, :, 1])     # (Ho, Wo, 2C)
    o_ref[0] = jnp.maximum(m[..., :C], m[..., C:])


def maxpool2x2(x):
    """nn.MaxPool2d(kernel_size=2) on NHWC input (H, W even)."""
    N, H, W, C = x.shape
    Ho, Wo = H // 2, W // 2
    xr = x.reshape(N, Ho, 2, Wo, 2 * C)   # free reshape: pair rows / cols
    return pl.pallas_call(
        _maxpool_kernel,
        out_shape=jax.ShapeDtypeStruct((N, Ho, Wo, C), x.dtype),
        grid_spec=pltpu.PrefetchScalarGridSpec(
            num_scalar_prefetch=0,
            grid=(N,),
            in_specs=[pl.BlockSpec((1, Ho, 2, Wo, 2 * C),
                                   lambda n: (n, 0, 0, 0, 0))],
            out_specs=pl.BlockSpec((1, Ho, Wo, C), lambda n: (n, 0, 0, 0)),
        ),
        compiler_params=pltpu.CompilerParams(
            dimension_semantics=("parallel",),
            vmem_limit_bytes=_VMEM_LIMIT,
        ),
    )(xr)


# ----------------------------------------------------------------------------
# Parameters (deterministic synthetic He init, stored in kernel layout:
#   conv   : w (k*k, Cin, Cout)  <->  torch weight[co, ci, dy, dx]
#   convT  : w (9,   Cin, Cout)  tap = kh*3+kw of the transposed kernel)
# ----------------------------------------------------------------------------
def _init_conv(key, ntaps, cin, cout):
    fan_in = ntaps * cin
    w = jax.random.normal(key, (ntaps, cin, cout), jnp.float32) * (2.0 / fan_in) ** 0.5
    return {"w": w.astype(jnp.bfloat16), "b": jnp.zeros((1, cout), jnp.float32)}


def init_unet_params(key):
    keys = iter(jax.random.split(key, 64))

    def conv(cin, cout, k=3):
        return _init_conv(next(keys), k * k, cin, cout)

    def convT(cin, cout):
        return _init_conv(next(keys), 9, cin, cout)

    p = {}
    p["enc1"] = {"c1": conv(3, 64), "c2": conv(64, 64)}
    p["enc2"] = {"c1": conv(64, 128), "c2": conv(128, 128)}
    p["enc3"] = {"c1": conv(128, 256), "c2": conv(256, 256)}
    p["enc4"] = {"c1": conv(256, 512), "c2": conv(512, 512)}
    p["enc5"] = {"c1": conv(512, 1024), "c2": conv(1024, 1024)}
    p["up"] = convT(1024, 512)
    p["dec1"] = {"c1": conv(1024, 512), "c2": conv(512, 512), "up": convT(512, 256)}
    p["dec2"] = {"c1": conv(512, 256), "c2": conv(256, 256), "up": convT(256, 128)}
    p["dec3"] = {"c1": conv(256, 128), "c2": conv(128, 128), "up": convT(128, 64)}
    p["double"] = {"c1": conv(128, 64), "c2": conv(64, 64)}
    p["last"] = conv(64, 4, k=1)
    return p


# ----------------------------------------------------------------------------
# UNet forward (mirrors the PyTorch module; torch.cat fused into the convs)
# ----------------------------------------------------------------------------
def _encoder(x, p, if_pool=True):
    if if_pool:
        x = maxpool2x2(x)
    x = conv2d((x,), p["c1"], ksize=3, relu=True)
    x = conv2d((x,), p["c2"], ksize=3, relu=True)
    return x


def _decoder(skip, up, p):
    x = conv2d((skip, up), p["c1"], ksize=3, relu=True)   # fused torch.cat
    x = conv2d((x,), p["c2"], ksize=3, relu=True)
    x = conv_transpose_2x(x, p["up"], relu=True)
    return x


def unet_forward(params, x_nchw):
    x = jnp.transpose(x_nchw, (0, 2, 3, 1)).astype(jnp.bfloat16)   # NCHW -> NHWC bf16
    x1 = _encoder(x, params["enc1"], if_pool=False)
    x2 = _encoder(x1, params["enc2"])
    x3 = _encoder(x2, params["enc3"])
    x4 = _encoder(x3, params["enc4"])
    x5 = _encoder(x4, params["enc5"])
    u = conv_transpose_2x(x5, params["up"], relu=True)
    u = _decoder(x4, u, params["dec1"])
    u = _decoder(x3, u, params["dec2"])
    u = _decoder(x2, u, params["dec3"])
    y = conv2d((x1, u), params["double"]["c1"], ksize=3, relu=True)
    y = conv2d((y,), params["double"]["c2"], ksize=3, relu=True)
    y = conv2d((y,), params["last"], ksize=1, relu=False,
               out_dtype=jnp.float32, pad_cout_to=128)
    return jnp.transpose(y, (0, 3, 1, 2))                          # NHWC -> NCHW


# ----------------------------------------------------------------------------
# Small correctness checks against XLA references (bf16 inputs, f32 math)
# ----------------------------------------------------------------------------
def _assert_close(name, got, ref, tol=2e-2):
    got = jnp.asarray(got, jnp.float32)
    ref = jnp.asarray(ref, jnp.float32)
    err = float(jnp.max(jnp.abs(got - ref)))
    scale = float(jnp.max(jnp.abs(ref))) + 1e-6
    assert err <= tol * scale, f"{name}: err={err}, scale={scale}"


def _self_test(key):
    k1, k2, k3, k4 = jax.random.split(key, 4)

    # 3x3 'same' conv vs lax.conv_general_dilated.
    N, H, W, Ci, Co = 1, 5, 7, 16, 24
    x = jax.random.normal(k1, (N, H, W, Ci), jnp.float32).astype(jnp.bfloat16)
    w = (jax.random.normal(k2, (9, Ci, Co), jnp.float32) * 0.1).astype(jnp.bfloat16)
    b = jax.random.normal(k3, (1, Co), jnp.float32) * 0.1
    got = conv2d((x,), {"w": w, "b": b}, ksize=3, relu=False, out_dtype=jnp.float32)
    wl = w.astype(jnp.float32).reshape(3, 3, Ci, Co)
    ref = jax.lax.conv_general_dilated(
        x.astype(jnp.float32), wl, (1, 1), "SAME",
        dimension_numbers=("NHWC", "HWIO", "NHWC")) + b.reshape(1, 1, 1, Co)
    _assert_close("conv3x3", got, ref)

    # ConvTranspose2d(3, s=2, p=1, op=1) vs lhs-dilated conv with flipped kernel.
    N, H, W, Ci, Co = 1, 4, 6, 16, 8
    x = jax.random.normal(k2, (N, H, W, Ci), jnp.float32).astype(jnp.bfloat16)
    w = (jax.random.normal(k3, (9, Ci, Co), jnp.float32) * 0.1).astype(jnp.bfloat16)
    b = jax.random.normal(k4, (1, Co), jnp.float32) * 0.1
    got = conv_transpose_2x(x, {"w": w, "b": b}, relu=False, out_dtype=jnp.float32)
    wt = w.astype(jnp.float32).reshape(3, 3, Ci, Co)[::-1, ::-1]
    ref = jax.lax.conv_general_dilated(
        x.astype(jnp.float32), wt, (1, 1), ((1, 2), (1, 2)),
        lhs_dilation=(2, 2),
        dimension_numbers=("NHWC", "HWIO", "NHWC")) + b.reshape(1, 1, 1, Co)
    _assert_close("conv_transpose2x", got, ref)


if __name__ == "__main__":
    key = jax.random.PRNGKey(0)
    pkey, xkey, tkey = jax.random.split(key, 3)

    _self_test(tkey)

    params = init_unet_params(pkey)
    # Batch=2, in-channels=3 (fixed by the module), spatial=16 (divisible by 2^4).
    x = jax.random.normal(xkey, (2, 3, 16, 16), jnp.float32)        # NCHW like PyTorch

    fwd = jax.jit(unet_forward)
    out = jax.block_until_ready(fwd(params, x))

    assert out.shape == (2, 4, 16, 16), out.shape
    assert bool(jnp.all(jnp.isfinite(out)))
    print("KERNEL_OK")
</pallas_src>

<mosaic_0001>
module attributes {stable_mosaic.version = 11 : i64} {
  func.func @_conv_kernel(%arg0: i32, %arg1: i32, %arg2: memref<1x71x16xbf16, #tpu.memory_space<vmem>>, %arg3: memref<9x16x24xbf16, #tpu.memory_space<vmem>>, %arg4: memref<1x24xf32, #tpu.memory_space<vmem>>, %arg5: memref<1x45x24xf32, #tpu.memory_space<vmem>>) attributes {dimension_semantics = [#tpu.dimension_semantics<parallel>, #tpu.dimension_semantics<parallel>], iteration_bounds = array<i64: 1, 1>, scalar_prefetch = 0 : i64, scratch_operands = 0 : i64, tpu.core_type = #tpu.core_type<tc>, window_params = [{transform_indices = @transform_0, window_bounds = array<i64: 1, 71, 16>}, {transform_indices = @transform_1, window_bounds = array<i64: 9, 16, 24>}, {transform_indices = @transform_2, window_bounds = array<i64: 1, 24>}, {transform_indices = @transform_3, window_bounds = array<i64: 1, 45, 24>}]} {
    %c0 = arith.constant 0 : index
    %c0_0 = arith.constant 0 : index
    %c0_1 = arith.constant 0 : index
    %0 = vector.load %arg2[%c0, %c0_0, %c0_1] : memref<1x71x16xbf16, #tpu.memory_space<vmem>>, vector<1x45x16xbf16>
    %1 = vector.shape_cast %0 : vector<1x45x16xbf16> to vector<45x16xbf16>
    %c0_2 = arith.constant 0 : index
    %c0_3 = arith.constant 0 : index
    %c0_4 = arith.constant 0 : index
    %2 = vector.load %arg3[%c0_2, %c0_3, %c0_4] : memref<9x16x24xbf16, #tpu.memory_space<vmem>>, vector<1x16x24xbf16>
    %3 = vector.shape_cast %2 : vector<1x16x24xbf16> to vector<16x24xbf16>
    %cst = arith.constant dense<0.000000e+00> : vector<45x24xf32>
    %4 = tpu.matmul %1, %3, %cst {dimension_numbers = #tpu.dot_dimension_numbers<[1], [0], [0], [1], [0, 0, 1, 1], [], []>} : vector<45x16xbf16>, vector<16x24xbf16>, vector<45x24xf32> -> vector<45x24xf32>
    %c0_5 = arith.constant 0 : index
    %c1 = arith.constant 1 : index
    %c0_6 = arith.constant 0 : index
    %5 = vector.load %arg2[%c0_5, %c1, %c0_6] : memref<1x71x16xbf16, #tpu.memory_space<vmem>>, vector<1x45x16xbf16>
    %6 = vector.shape_cast %5 : vector<1x45x16xbf16> to vector<45x16xbf16>
    %c1_7 = arith.constant 1 : index
    %c0_8 = arith.constant 0 : index
    %c0_9 = arith.constant 0 : index
    %7 = vector.load %arg3[%c1_7, %c0_8, %c0_9] : memref<9x16x24xbf16, #tpu.memory_space<vmem>>, vector<1x16x24xbf16>
    %8 = vector.shape_cast %7 : vector<1x16x24xbf16> to vector<16x24xbf16>
    %cst_10 = arith.constant dense<0.000000e+00> : vector<45x24xf32>
    %9 = tpu.matmul %6, %8, %cst_10 {dimension_numbers = #tpu.dot_dimension_numbers<[1], [0], [0], [1], [0, 0, 1, 1], [], []>} : vector<45x16xbf16>, vector<16x24xbf16>, vector<45x24xf32> -> vector<45x24xf32>
    %10 = arith.addf %4, %9 : vector<45x24xf32>
    %c0_11 = arith.constant 0 : index
    %c2 = arith.constant 2 : index
    %c0_12 = arith.constant 0 : index
    %11 = vector.load %arg2[%c0_11, %c2, %c0_12] : memref<1x71x16xbf16, #tpu.memory_space<vmem>>, vector<1x45x16xbf16>
    %12 = vector.shape_cast %11 : vector<1x45x16xbf16> to vector<45x16xbf16>
    %c2_13 = arith.constant 2 : index
    %c0_14 = arith.constant 0 : index
    %c0_15 = arith.constant 0 : index
    %13 = vector.load %arg3[%c2_13, %c0_14, %c0_15] : memref<9x16x24xbf16, #tpu.memory_space<vmem>>, vector<1x16x24xbf16>
    %14 = vector.shape_cast %13 : vector<1x16x24xbf16> to vector<16x24xbf16>
    %cst_16 = arith.constant dense<0.000000e+00> : vector<45x24xf32>
    %15 = tpu.matmul %12, %14, %cst_16 {dimension_numbers = #tpu.dot_dimension_numbers<[1], [0], [0], [1], [0, 0, 1, 1], [], []>} : vector<45x16xbf16>, vector<16x24xbf16>, vector<45x24xf32> -> vector<45x24xf32>
    %16 = arith.addf %10, %15 : vector<45x24xf32>
    %c0_17 = arith.constant 0 : index
    %c9 = arith.constant 9 : index
    %c0_18 = arith.constant 0 : index
    %17 = vector.load %arg2[%c0_17, %c9, %c0_18] : memref<1x71x16xbf16, #tpu.memory_space<vmem>>, vector<1x45x16xbf16>
    %18 = vector.shape_cast %17 : vector<1x45x16xbf16> to vector<45x16xbf16>
    %c3 = arith.constant 3 : index
    %c0_19 = arith.constant 0 : index
    %c0_20 = arith.constant 0 : index
    %19 = vector.load %arg3[%c3, %c0_19, %c0_20] : memref<9x16x24xbf16, #tpu.memory_space<vmem>>, vector<1x16x24xbf16>
    %20 = vector.shape_cast %19 : vector<1x16x24xbf16> to vector<16x24xbf16>
    %cst_21 = arith.constant dense<0.000000e+00> : vector<45x24xf32>
    %21 = tpu.matmul %18, %20, %cst_21 {dimension_numbers = #tpu.dot_dimension_numbers<[1], [0], [0], [1], [0, 0, 1, 1], [], []>} : vector<45x16xbf16>, vector<16x24xbf16>, vector<45x24xf32> -> vector<45x24xf32>
    %22 = arith.addf %16, %21 : vector<45x24xf32>
    %c0_22 = arith.constant 0 : index
    %c10 = arith.constant 10 : index
    %c0_23 = arith.constant 0 : index
    %23 = vector.load %arg2[%c0_22, %c10, %c0_23] : memref<1x71x16xbf16, #tpu.memory_space<vmem>>, vector<1x45x16xbf16>
    %24 = vector.shape_cast %23 : vector<1x45x16xbf16> to vector<45x16xbf16>
    %c4 = arith.constant 4 : index
    %c0_24 = arith.constant 0 : index
    %c0_25 = arith.constant 0 : index
    %25 = vector.load %arg3[%c4, %c0_24, %c0_25] : memref<9x16x24xbf16, #tpu.memory_space<vmem>>, vector<1x16x24xbf16>
    %26 = vector.shape_cast %25 : vector<1x16x24xbf16> to vector<16x24xbf16>
    %cst_26 = arith.constant dense<0.000000e+00> : vector<45x24xf32>
    %27 = tpu.matmul %24, %26, %cst_26 {dimension_numbers = #tpu.dot_dimension_numbers<[1], [0], [0], [1], [0, 0, 1, 1], [], []>} : vector<45x16xbf16>, vector<16x24xbf16>, vector<45x24xf32> -> vector<45x24xf32>
    %28 = arith.addf %22, %27 : vector<45x24xf32>
    %c0_27 = arith.constant 0 : index
    %c11 = arith.constant 11 : index
    %c0_28 = arith.constant 0 : index
    %29 = vector.load %arg2[%c0_27, %c11, %c0_28] : memref<1x71x16xbf16, #tpu.memory_space<vmem>>, vector<1x45x16xbf16>
    %30 = vector.shape_cast %29 : vector<1x45x16xbf16> to vector<45x16xbf16>
    %c5 = arith.constant 5 : index
    %c0_29 = arith.constant 0 : index
    %c0_30 = arith.constant 0 : index
    %31 = vector.load %arg3[%c5, %c0_29, %c0_30] : memref<9x16x24xbf16, #tpu.memory_space<vmem>>, vector<1x16x24xbf16>
    %32 = vector.shape_cast %31 : vector<1x16x24xbf16> to vector<16x24xbf16>
    %cst_31 = arith.constant dense<0.000000e+00> : vector<45x24xf32>
    %33 = tpu.matmul %30, %32, %cst_31 {dimension_numbers = #tpu.dot_dimension_numbers<[1], [0], [0], [1], [0, 0, 1, 1], [], []>} : vector<45x16xbf16>, vector<16x24xbf16>, vector<45x24xf32> -> vector<45x24xf32>
    %34 = arith.addf %28, %33 : vector<45x24xf32>
    %c0_32 = arith.constant 0 : index
    %c18 = arith.constant 18 : index
    %c0_33 = arith.constant 0 : index
    %35 = vector.load %arg2[%c0_32, %c18, %c0_33] : memref<1x71x16xbf16, #tpu.memory_space<vmem>>, vector<1x45x16xbf16>
    %36 = vector.shape_cast %35 : vector<1x45x16xbf16> to vector<45x16xbf16>
    %c6 = arith.constant 6 : index
    %c0_34 = arith.constant 0 : index
    %c0_35 = arith.constant 0 : index
    %37 = vector.load %arg3[%c6, %c0_34, %c0_35] : memref<9x16x24xbf16, #tpu.memory_space<vmem>>, vector<1x16x24xbf16>
    %38 = vector.shape_cast %37 : vector<1x16x24xbf16> to vector<16x24xbf16>
    %cst_36 = arith.constant dense<0.000000e+00> : vector<45x24xf32>
    %39 = tpu.matmul %36, %38, %cst_36 {dimension_numbers = #tpu.dot_dimension_numbers<[1], [0], [0], [1], [0, 0, 1, 1], [], []>} : vector<45x16xbf16>, vector<16x24xbf16>, vector<45x24xf32> -> vector<45x24xf32>
    %40 = arith.addf %34, %39 : vector<45x24xf32>
    %c0_37 = arith.constant 0 : index
    %c19 = arith.constant 19 : index
    %c0_38 = arith.constant 0 : index
    %41 = vector.load %arg2[%c0_37, %c19, %c0_38] : memref<1x71x16xbf16, #tpu.memory_space<vmem>>, vector<1x45x16xbf16>
    %42 = vector.shape_cast %41 : vector<1x45x16xbf16> to vector<45x16xbf16>
    %c7 = arith.constant 7 : index
    %c0_39 = arith.constant 0 : index
    %c0_40 = arith.constant 0 : index
    %43 = vector.load %arg3[%c7, %c0_39, %c0_40] : memref<9x16x24xbf16, #tpu.memory_space<vmem>>, vector<1x16x24xbf16>
    %44 = vector.shape_cast %43 : vector<1x16x24xbf16> to vector<16x24xbf16>
    %cst_41 = arith.constant dense<0.000000e+00> : vector<45x24xf32>
    %45 = tpu.matmul %42, %44, %cst_41 {dimension_numbers = #tpu.dot_dimension_numbers<[1], [0], [0], [1], [0, 0, 1, 1], [], []>} : vector<45x16xbf16>, vector<16x24xbf16>, vector<45x24xf32> -> vector<45x24xf32>
    %46 = arith.addf %40, %45 : vector<45x24xf32>
    %c0_42 = arith.constant 0 : index
    %c20 = arith.constant 20 : index
    %c0_43 = arith.constant 0 : index
    %47 = vector.load %arg2[%c0_42, %c20, %c0_43] : memref<1x71x16xbf16, #tpu.memory_space<vmem>>, vector<1x45x16xbf16>
    %48 = vector.shape_cast %47 : vector<1x45x16xbf16> to vector<45x16xbf16>
    %c8 = arith.constant 8 : index
    %c0_44 = arith.constant 0 : index
    %c0_45 = arith.constant 0 : index
    %49 = vector.load %arg3[%c8, %c0_44, %c0_45] : memref<9x16x24xbf16, #tpu.memory_space<vmem>>, vector<1x16x24xbf16>
    %50 = vector.shape_cast %49 : vector<1x16x24xbf16> to vector<16x24xbf16>
    %cst_46 = arith.constant dense<0.000000e+00> : vector<45x24xf32>
    %51 = tpu.matmul %48, %50, %cst_46 {dimension_numbers = #tpu.dot_dimension_numbers<[1], [0], [0], [1], [0, 0, 1, 1], [], []>} : vector<45x16xbf16>, vector<16x24xbf16>, vector<45x24xf32> -> vector<45x24xf32>
    %52 = arith.addf %46, %51 : vector<45x24xf32>
    %c0_47 = arith.constant 0 : index
    %c0_48 = arith.constant 0 : index
    %53 = vector.load %arg4[%c0_47, %c0_48] : memref<1x24xf32, #tpu.memory_space<vmem>>, vector<1x24xf32>
    %54 = vector.broadcast %53 : vector<1x24xf32> to vector<45x24xf32>
    %55 = arith.addf %52, %54 : vector<45x24xf32>
    %c0_49 = arith.constant 0 : index
    %c0_50 = arith.constant 0 : index
    %c0_51 = arith.constant 0 : index
    %56 = vector.load %arg5[%c0_49, %c0_50, %c0_51] : memref<1x45x24xf32, #tpu.memory_space<vmem>>, vector<1x45x24xf32>
    %57 = vector.shape_cast %56 : vector<1x45x24xf32> to vector<45x24xf32>
    %58 = vector.shape_cast %55 : vector<45x24xf32> to vector<1x45x24xf32>
    tpu.vector_store %arg5[%c0_49, %c0_50, %c0_51], %58 {strides = array<i32>} : memref<1x45x24xf32, #tpu.memory_space<vmem>>, vector<1x45x24xf32>,
    return
  }
  func.func @transform_0(%arg0: i32, %arg1: i32) -> (i32, i32, i32) {
    %c0_i32 = arith.constant 0 : i32
    %c0_i32_0 = arith.constant 0 : i32
    %c0_i32_1 = arith.constant 0 : i32
    return %arg1, %c0_i32, %c0_i32_0 : i32, i32, i32
  }
  func.func @transform_1(%arg0: i32, %arg1: i32) -> (i32, i32, i32) {
    %c0_i32 = arith.constant 0 : i32
    %c0_i32_0 = arith.constant 0 : i32
    %c0_i32_1 = arith.constant 0 : i32
    return %c0_i32, %c0_i32_0, %arg0 : i32, i32, i32
  }
  func.func @transform_2(%arg0: i32, %arg1: i32) -> (i32, i32) {
    %c0_i32 = arith.constant 0 : i32
    %c0_i32_0 = arith.constant 0 : i32
    return %c0_i32, %arg0 : i32, i32
  }
  func.func @transform_3(%arg0: i32, %arg1: i32) -> (i32, i32, i32) {
    %c0_i32 = arith.constant 0 : i32
    %c0_i32_0 = arith.constant 0 : i32
    return %arg1, %c0_i32, %arg0 : i32, i32, i32
  }
}

</mosaic_0001>

<llo_original>
// kernel: tpu_custom_call.1
$region0: #{tpu_custom_call.1}
  #allocation0 [shape = 'u32[]', space=smem, size = 0x4, offset = 0x4, fixed_abs, tag = 'smem constant byte address 0x4 - core index']
  #allocation1 [shape = 'u32[72,128]{1,0:T(1,128)}', space=vmem, size = 0x9000, scoped, tag = 'internal scratch']
  %s0 = inlined_call_operand.vmem [shape: bf16[1,71,16], index: 0, kind: input, shape index: {}]
  %s1 = inlined_call_operand.hbm [shape: bf16[9,16,24], index: 1, kind: input, shape index: {}]
  %s2 = inlined_call_operand.vmem [shape: f32[1,24], index: 2, kind: input, shape index: {}]
  %s3 = inlined_call_operand.vmem [shape: f32[1,45,24], index: 3, kind: output, shape index: {}]
  %s4 = sld [smem:[#allocation0]]
  $region26: #{tpu_custom_call.1} parent=0
    _
  %s6 = ssub.s32 1, %s4
  %s7 = scalar_select 0, %s6, %s4
  $region1: #{tpu_custom_call.1} parent=0
    #allocation2 [shape = 'u8[36864]{0}', space=vmem, size = 0x9000, scoped, tag = 'input window, operand 1, single buffered']
    #allocation3 [shape = 's32[1]{0}', space=sflag, size = 0x4, scoped, tag = 'scoped memory for tpu_custom_call.1']
    %8 = vsyncpa [#allocation3], 0
    // Predicated region
    $region2: #{tpu_custom_call.1} parent=1 // pred_check
      _
    $region3: #{tpu_custom_call.1} parent=1 // pred_check_branch
      %10 = sbr.rel (0) target = $region5
    $region4: #{tpu_custom_call.1} parent=1 // pred_region
      _
    $region5: #{tpu_custom_call.1} parent=1 // pred_fallthru
      _
    // Predicated region
    $region6: #{tpu_custom_call.1} parent=1 // pred_check
      _
    $region7: #{tpu_custom_call.1} parent=1 // pred_check_branch
      %12 = sbr.rel (0) target = $region9
    $region8: #{tpu_custom_call.1} parent=1 // pred_region
      %14 = vsyncadd [#allocation3], 0
      %s15 = sshll.u32 %s1, 4
      %s16 = int_to_ptr.hbm [resolvable:$true] %s15
      %s17 = sshll.u32 [#allocation2], 4
      %s18 = int_to_ptr.vmem [resolvable:$true] %s17
      %23 = dma.hbm_to_vmem [thread:$0]  %s16, 1152, %s18, [#allocation3], 64, 64, 4
    $region9: #{tpu_custom_call.1} parent=1 // pred_fallthru
      _
    // Predicated region
    $region10: #{tpu_custom_call.1} parent=1 // pred_check
      _
    $region11: #{tpu_custom_call.1} parent=1 // pred_check_branch
      %25 = sbr.rel (0) target = $region13
    $region12: #{tpu_custom_call.1} parent=1 // pred_region
      _
    $region13: #{tpu_custom_call.1} parent=1 // pred_fallthru
      _
    // Predicated region
    $region14: #{tpu_custom_call.1} parent=1 // pred_check
      _
    $region15: #{tpu_custom_call.1} parent=1 // pred_check_branch
      %27 = sbr.rel (0) target = $region17
    $region16: #{tpu_custom_call.1} parent=1 // pred_region
      %29 = dma.done [#allocation3], 1152
    $region17: #{tpu_custom_call.1} parent=1 // pred_fallthru
      _
    %v31 = vld [vmem:[%s0] sm:$0xf]
    %v32 = vld [vmem:[%s0 + $0x4] sm:$0xf]
    %v33 = vld [vmem:[%s0 + $0x8] sm:$0xf]
    %v34 = vld [vmem:[%s0 + $0xc] sm:$0xf]
    %v35 = vld [vmem:[%s0 + $0x10] sm:$0xf]
    %v36 = vld [vmem:[%s0 + $0x14] sm:$0x7]
    %v37 = vld [vmem:[#allocation2] sm:$0xf]
    %v38 = vld [vmem:[#allocation2 + $0x4] sm:$0xf]
    %s39 = scalar_lea.vmem [#allocation2], 8
    %v40 = vld [vmem:[%s39] sm:$0xf]
    %v41 = vld [vmem:[%s39 + $0x4] sm:$0xf]
    %v48 = vunpack.c.l.b16 %v31
    %v49 = vunpack.c.l.b16 %v32
    %v50 = vunpack.c.l.b16 %v33
    %v51 = vunpack.c.l.b16 %v34
    %v52 = vunpack.c.l.b16 %v35
    %v53 = vunpack.c.l.b16 %v36
    %v54 = vpack.c.b16 %v49, %v48
    %v55 = vpack.c.b16 %v51, %v50
    %v56 = vpack.c.b16 %v53, %v52
    %vm57 = vsmask.f32 7424
    %v59 = vshrl.u32 %v54, 16
    %v61 = vshll.u32 %v54, 16
    %v63 = vrot.slane %v61, 1
    %v64 = vor.u32 %v59, %v63
    %v66 = vshll.u32 %v55, 16
    %v68 = vrot.slane %v66, 1
    %v69 = vsel %vm57, %v64, %v68
    %v70 = vshrl.u32 %v55, 16
    %v72 = vor.u32 %v70, %v68
    %v74 = vshll.u32 %v56, 16
    %v76 = vrot.slane %v74, 1
    %v77 = vsel %vm57, %v72, %v76
    %v78 = vshrl.u32 %v56, 16
    %v80 = vor.u32 %v78, %v76
    %v83 = vunpack.c.l.b16 %v40
    %v84 = vunpack.c.l.b16 %v41
    %v85 = vpack.c.b16 %v84, %v83
    %vm87 = vcmask 130048
    %v89 = vsel %vm87, %v69, 0
    %v92 = vsel %vm87, %v77, 0
    %v95 = vsel %vm87, %v80, 0
    %97 = vmatpush.bf16.msra.mxu0 0
    %98 = vmatpush.bf16.msra.mxu0 0
    %99 = vmatpush.bf16.msra.mxu0 0
    %100 = vmatpush.bf16.msra.mxu0 0
    %101 = vmatpush.bf16.msra.mxu0 0
    %102 = vmatpush.bf16.msra.mxu0 0
    %103 = vmatpush.bf16.msra.mxu0 0
    %104 = vmatpush.bf16.msra.mxu0 %v85
    %105 = vmatmul.bf16.gmra.mxu0 %v89
    %v106 = vpop.f32.mrf.mxu0
    %v107 = vadd.f32 0.0, %v106
    %v108 = vpop.f32.mrf.mxu0
    %v109 = vadd.f32 0.0, %v108
    %110 = vmatmul.bf16.gmra.mxu0 %v92
    %v111 = vpop.f32.mrf.mxu0
    %v112 = vadd.f32 0.0, %v111
    %v113 = vpop.f32.mrf.mxu0
    %v114 = vadd.f32 0.0, %v113
    %115 = vmatmul.bf16.gmra.mxu0 %v95
    %v116 = vpop.f32.mrf.mxu0
    %v117 = vadd.f32 0.0, %v116
    %v118 = vpop.f32.mrf.mxu0
    %v119 = vadd.f32 0.0, %v118
    %120 = vdwg.mxu0
    %v123 = vunpack.c.l.b16 %v37
    %v124 = vunpack.c.l.b16 %v38
    %v125 = vpack.c.b16 %v124, %v123
    %v127 = vsel %vm87, %v54, 0
    %v129 = vsel %vm87, %v55, 0
    %v131 = vsel %vm87, %v56, 0
    %133 = vmatpush.bf16.msra.mxu0 0
    %134 = vmatpush.bf16.msra.mxu0 0
    %135 = vmatpush.bf16.msra.mxu0 0
    %136 = vmatpush.bf16.msra.mxu0 0
    %137 = vmatpush.bf16.msra.mxu0 0
    %138 = vmatpush.bf16.msra.mxu0 0
    %139 = vmatpush.bf16.msra.mxu0 0
    %140 = vmatpush.bf16.msra.mxu0 %v125
    %141 = vmatmul.bf16.gmra.mxu0 %v127
    %v142 = vpop.f32.mrf.mxu0
    %v143 = vadd.f32 %v107, %v142
    %v144 = vpop.f32.mrf.mxu0
    %v145 = vadd.f32 %v109, %v144
    %146 = vmatmul.bf16.gmra.mxu0 %v129
    %v147 = vpop.f32.mrf.mxu0
    %v148 = vadd.f32 %v112, %v147
    %v149 = vpop.f32.mrf.mxu0
    %v150 = vadd.f32 %v114, %v149
    %151 = vmatmul.bf16.gmra.mxu0 %v131
    %v152 = vpop.f32.mrf.mxu0
    %v153 = vadd.f32 %v117, %v152
    %v154 = vpop.f32.mrf.mxu0
    %v155 = vadd.f32 %v119, %v154
    %156 = vdwg.mxu0
    %v157 = vld [vmem:[%s0] sm:$0xe]
    %v158 = vld [vmem:[%s0 + $0x14] sm:$0xf]
    %s159 = scalar_lea.vmem [#allocation2], 16
    %v160 = vld [vmem:[%s159] sm:$0xf]
    %v161 = vld [vmem:[%s159 + $0x4] sm:$0xf]
    %v164 = vunpack.c.l.b16 %v157
    %v165 = vunpack.c.l.b16 %v158
    %v166 = vpack.c.b16 %v49, %v164
    %v167 = vpack.c.b16 %v165, %v52
    %vm168 = vcmask 1046528
    %v169 = vrot.slane %v166, 1
    %v170 = vrot.slane %v55, 1
    %v171 = vsel %vm168, %v169, %v170
    %v172 = vrot.slane %v167, 1
    %v173 = vsel %vm168, %v170, %v172
    %v176 = vunpack.c.l.b16 %v160
    %v177 = vunpack.c.l.b16 %v161
    %v178 = vpack.c.b16 %v177, %v176
    %v181 = vsel %vm87, %v171, 0
    %v184 = vsel %vm87, %v173, 0
    %v187 = vsel %vm87, %v172, 0
    %189 = vmatpush.bf16.msra.mxu0 0
    %190 = vmatpush.bf16.msra.mxu0 0
    %191 = vmatpush.bf16.msra.mxu0 0
    %192 = vmatpush.bf16.msra.mxu0 0
    %193 = vmatpush.bf16.msra.mxu0 0
    %194 = vmatpush.bf16.msra.mxu0 0
    %195 = vmatpush.bf16.msra.mxu0 0
    %196 = vmatpush.bf16.msra.mxu0 %v178
    %197 = vmatmul.bf16.gmra.mxu0 %v181
    %v198 = vpop.f32.mrf.mxu0
    %v199 = vadd.f32 0.0, %v198
    %v200 = vpop.f32.mrf.mxu0
    %v201 = vadd.f32 0.0, %v200
    %202 = vmatmul.bf16.gmra.mxu0 %v184
    %v203 = vpop.f32.mrf.mxu0
    %v204 = vadd.f32 0.0, %v203
    %v205 = vpop.f32.mrf.mxu0
    %v206 = vadd.f32 0.0, %v205
    %207 = vmatmul.bf16.gmra.mxu0 %v187
    %v208 = vpop.f32.mrf.mxu0
    %v209 = vadd.f32 0.0, %v208
    %v210 = vpop.f32.mrf.mxu0
    %v211 = vadd.f32 0.0, %v210
    %212 = vdwg.mxu0
    %v213 = vadd.f32 %v143, %v199
    %v214 = vadd.f32 %v145, %v201
    %v215 = vadd.f32 %v148, %v204
    %v216 = vadd.f32 %v150, %v206
    %v217 = vadd.f32 %v153, %v209
    %v218 = vadd.f32 %v155, %v211
    %v219 = vld [vmem:[%s0 + $0x4] sm:$0xf]
    %v220 = vld [vmem:[%s0 + $0x8] sm:$0xf]
    %v221 = vld [vmem:[%s0 + $0xc] sm:$0xf]
    %v222 = vld [vmem:[%s0 + $0x10] sm:$0xf]
    %v223 = vld [vmem:[%s0 + $0x14] sm:$0xf]
    %v224 = vld [vmem:[%s0 + $0x18] sm:$0x7]
    %s225 = scalar_lea.vmem [#allocation2], 24
    %v226 = vld [vmem:[%s225] sm:$0xf]
    %v227 = vld [vmem:[%s225 + $0x4] sm:$0xf]
    %v234 = vunpack.c.l.b16 %v219
    %v235 = vunpack.c.l.b16 %v220
    %v236 = vunpack.c.l.b16 %v221
    %v237 = vunpack.c.l.b16 %v222
    %v238 = vunpack.c.l.b16 %v223
    %v239 = vunpack.c.l.b16 %v224
    %v240 = vpack.c.b16 %v235, %v234
    %v241 = vpack.c.b16 %v237, %v236
    %v242 = vpack.c.b16 %v239, %v238
    %v244 = vshrl.u32 %v240, 16
    %v246 = vshll.u32 %v240, 16
    %v248 = vrot.slane %v246, 1
    %v249 = vor.u32 %v244, %v248
    %v251 = vshll.u32 %v241, 16
    %v253 = vrot.slane %v251, 1
    %v254 = vsel %vm57, %v249, %v253
    %v255 = vshrl.u32 %v241, 16
    %v257 = vor.u32 %v255, %v253
    %v259 = vshll.u32 %v242, 16
    %v261 = vrot.slane %v259, 1
    %v262 = vsel %vm57, %v257, %v261
    %v263 = vshrl.u32 %v242, 16
    %v265 = vor.u32 %v263, %v261
    %v268 = vunpack.c.l.b16 %v226
    %v269 = vunpack.c.l.b16 %v227
    %v270 = vpack.c.b16 %v269, %v268
    %v273 = vsel %vm87, %v254, 0
    %v276 = vsel %vm87, %v262, 0
    %v279 = vsel %vm87, %v265, 0
    %281 = vmatpush.bf16.msra.mxu0 0
    %282 = vmatpush.bf16.msra.mxu0 0
    %283 = vmatpush.bf16.msra.mxu0 0
    %284 = vmatpush.bf16.msra.mxu0 0
    %285 = vmatpush.bf16.msra.mxu0 0
    %286 = vmatpush.bf16.msra.mxu0 0
    %287 = vmatpush.bf16.msra.mxu0 0
    %288 = vmatpush.bf16.msra.mxu0 %v270
    %289 = vmatmul.bf16.gmra.mxu0 %v273
    %v290 = vpop.f32.mrf.mxu0
    %v291 = vadd.f32 0.0, %v290
    %v292 = vpop.f32.mrf.mxu0
    %v293 = vadd.f32 0.0, %v292
    %294 = vmatmul.bf16.gmra.mxu0 %v276
    %v295 = vpop.f32.mrf.mxu0
    %v296 = vadd.f32 0.0, %v295
    %v297 = vpop.f32.mrf.mxu0
    %v298 = vadd.f32 0.0, %v297
    %299 = vmatmul.bf16.gmra.mxu0 %v279
    %v300 = vpop.f32.mrf.mxu0
    %v301 = vadd.f32 0.0, %v300
    %v302 = vpop.f32.mrf.mxu0
    %v303 = vadd.f32 0.0, %v302
    %304 = vdwg.mxu0
    %v305 = vadd.f32 %v213, %v291
    %v306 = vadd.f32 %v214, %v293
    %v307 = vadd.f32 %v215, %v296
    %v308 = vadd.f32 %v216, %v298
    %v309 = vadd.f32 %v217, %v301
    %v310 = vadd.f32 %v218, %v303
    %v311 = vld [vmem:[%s0 + $0x4] sm:$0xe]
    %v312 = vld [vmem:[%s0 + $0x18] sm:$0xf]
    %s313 = scalar_lea.vmem [#allocation2], 32
    %v314 = vld [vmem:[%s313] sm:$0xf]
    %v315 = vld [vmem:[%s313 + $0x4] sm:$0xf]
    %v318 = vunpack.c.l.b16 %v311
    %v319 = vunpack.c.l.b16 %v312
    %v320 = vpack.c.b16 %v235, %v318
    %v321 = vpack.c.b16 %v319, %v238
    %v322 = vrot.slane %v320, 1
    %v323 = vrot.slane %v241, 1
    %v324 = vsel %vm168, %v322, %v323
    %v325 = vrot.slane %v321, 1
    %v326 = vsel %vm168, %v323, %v325
    %v329 = vunpack.c.l.b16 %v314
    %v330 = vunpack.c.l.b16 %v315
    %v331 = vpack.c.b16 %v330, %v329
    %v334 = vsel %vm87, %v324, 0
    %v337 = vsel %vm87, %v326, 0
    %v340 = vsel %vm87, %v325, 0
    %342 = vmatpush.bf16.msra.mxu0 0
    %343 = vmatpush.bf16.msra.mxu0 0
    %344 = vmatpush.bf16.msra.mxu0 0
    %345 = vmatpush.bf16.msra.mxu0 0
    %346 = vmatpush.bf16.msra.mxu0 0
    %347 = vmatpush.bf16.msra.mxu0 0
    %348 = vmatpush.bf16.msra.mxu0 0
    %349 = vmatpush.bf16.msra.mxu0 %v331
    %350 = vmatmul.bf16.gmra.mxu0 %v334
    %v351 = vpop.f32.mrf.mxu0
    %v352 = vadd.f32 0.0, %v351
    %v353 = vpop.f32.mrf.mxu0
    %v354 = vadd.f32 0.0, %v353
    %355 = vmatmul.bf16.gmra.mxu0 %v337
    %v356 = vpop.f32.mrf.mxu0
    %v357 = vadd.f32 0.0, %v356
    %v358 = vpop.f32.mrf.mxu0
    %v359 = vadd.f32 0.0, %v358
    %360 = vmatmul.bf16.gmra.mxu0 %v340
    %v361 = vpop.f32.mrf.mxu0
    %v362 = vadd.f32 0.0, %v361
    %v363 = vpop.f32.mrf.mxu0
    %v364 = vadd.f32 0.0, %v363
    %365 = vdwg.mxu0
    %v366 = vadd.f32 %v305, %v352
    %v367 = vadd.f32 %v306, %v354
    %v368 = vadd.f32 %v307, %v357
    %v369 = vadd.f32 %v308, %v359
    %v370 = vadd.f32 %v309, %v362
    %v371 = vadd.f32 %v310, %v364
    %s372 = scalar_lea.vmem [#allocation2], 40
    %v373 = vld [vmem:[%s372] sm:$0xf]
    %v374 = vld [vmem:[%s372 + $0x4] sm:$0xf]
    %vm375 = vsmask.f32 6400
    %v377 = vshrl.u32 %v320, 16
    %v379 = vrot.slane %v377, 1
    %v380 = vshll.u32 %v320, 16
    %v382 = vrot.slane %v380, 2
    %v383 = vor.u32 %v379, %v382
    %v384 = vrot.slane %v255, 1
    %v385 = vrot.slane %v251, 2
    %v386 = vor.u32 %v384, %v385
    %v387 = vsel %vm375, %v383, %v386
    %v389 = vshrl.u32 %v321, 16
    %v391 = vrot.slane %v389, 1
    %v392 = vshll.u32 %v321, 16
    %v394 = vrot.slane %v392, 2
    %v395 = vor.u32 %v391, %v394
    %v396 = vsel %vm375, %v386, %v395
    %v399 = vunpack.c.l.b16 %v373
    %v400 = vunpack.c.l.b16 %v374
    %v401 = vpack.c.b16 %v400, %v399
    %v404 = vsel %vm87, %v387, 0
    %v407 = vsel %vm87, %v396, 0
    %v410 = vsel %vm87, %v395, 0
    %412 = vmatpush.bf16.msra.mxu0 0
    %413 = vmatpush.bf16.msra.mxu0 0
    %414 = vmatpush.bf16.msra.mxu0 0
    %415 = vmatpush.bf16.msra.mxu0 0
    %416 = vmatpush.bf16.msra.mxu0 0
    %417 = vmatpush.bf16.msra.mxu0 0
    %418 = vmatpush.bf16.msra.mxu0 0
    %419 = vmatpush.bf16.msra.mxu0 %v401
    %420 = vmatmul.bf16.gmra.mxu0 %v404
    %v421 = vpop.f32.mrf.mxu0
    %v422 = vadd.f32 0.0, %v421
    %v423 = vpop.f32.mrf.mxu0
    %v424 = vadd.f32 0.0, %v423
    %425 = vmatmul.bf16.gmra.mxu0 %v407
    %v426 = vpop.f32.mrf.mxu0
    %v427 = vadd.f32 0.0, %v426
    %v428 = vpop.f32.mrf.mxu0
    %v429 = vadd.f32 0.0, %v428
    %430 = vmatmul.bf16.gmra.mxu0 %v410
    %v431 = vpop.f32.mrf.mxu0
    %v432 = vadd.f32 0.0, %v431
    %v433 = vpop.f32.mrf.mxu0
    %v434 = vadd.f32 0.0, %v433
    %435 = vdwg.mxu0
    %v436 = vadd.f32 %v366, %v422
    %v437 = vadd.f32 %v367, %v424
    %v438 = vadd.f32 %v368, %v427
    %v439 = vadd.f32 %v369, %v429
    %v440 = vadd.f32 %v370, %v432
    %v441 = vadd.f32 %v371, %v434
    %v442 = vld [vmem:[%s0 + $0x8] sm:$0xe]
    %v443 = vld [vmem:[%s0 + $0xc] sm:$0xf]
    %v444 = vld [vmem:[%s0 + $0x10] sm:$0xf]
    %v445 = vld [vmem:[%s0 + $0x14] sm:$0xf]
    %v446 = vld [vmem:[%s0 + $0x18] sm:$0xf]
    %v447 = vld [vmem:[%s0 + $0x1c] sm:$0xf]
    %s448 = scalar_lea.vmem [#allocation2], 48
    %v449 = vld [vmem:[%s448] sm:$0xf]
    %v450 = vld [vmem:[%s448 + $0x4] sm:$0xf]
    %v457 = vunpack.c.l.b16 %v442
    %v458 = vunpack.c.l.b16 %v443
    %v459 = vunpack.c.l.b16 %v444
    %v460 = vunpack.c.l.b16 %v445
    %v461 = vunpack.c.l.b16 %v446
    %v462 = vunpack.c.l.b16 %v447
    %v463 = vpack.c.b16 %v458, %v457
    %v464 = vpack.c.b16 %v460, %v459
    %v465 = vpack.c.b16 %v462, %v461
    %v466 = vrot.slane %v463, 1
    %v467 = vrot.slane %v464, 1
    %v468 = vsel %vm168, %v466, %v467
    %v469 = vrot.slane %v465, 1
    %v470 = vsel %vm168, %v467, %v469
    %v473 = vunpack.c.l.b16 %v449
    %v474 = vunpack.c.l.b16 %v450
    %v475 = vpack.c.b16 %v474, %v473
    %v478 = vsel %vm87, %v468, 0
    %v481 = vsel %vm87, %v470, 0
    %v484 = vsel %vm87, %v469, 0
    %486 = vmatpush.bf16.msra.mxu0 0
    %487 = vmatpush.bf16.msra.mxu0 0
    %488 = vmatpush.bf16.msra.mxu0 0
    %489 = vmatpush.bf16.msra.mxu0 0
    %490 = vmatpush.bf16.msra.mxu0 0
    %491 = vmatpush.bf16.msra.mxu0 0
    %492 = vmatpush.bf16.msra.mxu0 0
    %493 = vmatpush.bf16.msra.mxu0 %v475
    %494 = vmatmul.bf16.gmra.mxu0 %v478
    %v495 = vpop.f32.mrf.mxu0
    %v496 = vadd.f32 0.0, %v495
    %v497 = vpop.f32.mrf.mxu0
    %v498 = vadd.f32 0.0, %v497
    %499 = vmatmul.bf16.gmra.mxu0 %v481
    %v500 = vpop.f32.mrf.mxu0
    %v501 = vadd.f32 0.0, %v500
    %v502 = vpop.f32.mrf.mxu0
    %v503 = vadd.f32 0.0, %v502
    %504 = vmatmul.bf16.gmra.mxu0 %v484
    %v505 = vpop.f32.mrf.mxu0
    %v506 = vadd.f32 0.0, %v505
    %v507 = vpop.f32.mrf.mxu0
    %v508 = vadd.f32 0.0, %v507
    %509 = vdwg.mxu0
    %v510 = vadd.f32 %v436, %v496
    %v511 = vadd.f32 %v437, %v498
    %v512 = vadd.f32 %v438, %v501
    %v513 = vadd.f32 %v439, %v503
    %v514 = vadd.f32 %v440, %v506
    %v515 = vadd.f32 %v441, %v508
    %s516 = scalar_lea.vmem [#allocation2], 56
    %v517 = vld [vmem:[%s516] sm:$0xf]
    %v518 = vld [vmem:[%s516 + $0x4] sm:$0xf]
    %v520 = vshrl.u32 %v463, 16
    %v522 = vrot.slane %v520, 1
    %v523 = vshll.u32 %v463, 16
    %v525 = vrot.slane %v523, 2
    %v526 = vor.u32 %v522, %v525
    %v528 = vshrl.u32 %v464, 16
    %v530 = vrot.slane %v528, 1
    %v531 = vshll.u32 %v464, 16
    %v533 = vrot.slane %v531, 2
    %v534 = vor.u32 %v530, %v533
    %v535 = vsel %vm375, %v526, %v534
    %v537 = vshrl.u32 %v465, 16
    %v539 = vrot.slane %v537, 1
    %v540 = vshll.u32 %v465, 16
    %v542 = vrot.slane %v540, 2
    %v543 = vor.u32 %v539, %v542
    %v544 = vsel %vm375, %v534, %v543
    %v547 = vunpack.c.l.b16 %v517
    %v548 = vunpack.c.l.b16 %v518
    %v549 = vpack.c.b16 %v548, %v547
    %v552 = vsel %vm87, %v535, 0
    %v555 = vsel %vm87, %v544, 0
    %v558 = vsel %vm87, %v543, 0
    %560 = vmatpush.bf16.msra.mxu0 0
    %561 = vmatpush.bf16.msra.mxu0 0
    %562 = vmatpush.bf16.msra.mxu0 0
    %563 = vmatpush.bf16.msra.mxu0 0
    %564 = vmatpush.bf16.msra.mxu0 0
    %565 = vmatpush.bf16.msra.mxu0 0
    %566 = vmatpush.bf16.msra.mxu0 0
    %567 = vmatpush.bf16.msra.mxu0 %v549
    %568 = vmatmul.bf16.gmra.mxu0 %v552
    %v569 = vpop.f32.mrf.mxu0
    %v570 = vadd.f32 0.0, %v569
    %v571 = vpop.f32.mrf.mxu0
    %v572 = vadd.f32 0.0, %v571
    %573 = vmatmul.bf16.gmra.mxu0 %v555
    %v574 = vpop.f32.mrf.mxu0
    %v575 = vadd.f32 0.0, %v574
    %v576 = vpop.f32.mrf.mxu0
    %v577 = vadd.f32 0.0, %v576
    %578 = vmatmul.bf16.gmra.mxu0 %v558
    %v579 = vpop.f32.mrf.mxu0
    %v580 = vadd.f32 0.0, %v579
    %v581 = vpop.f32.mrf.mxu0
    %v582 = vadd.f32 0.0, %v581
    %583 = vdwg.mxu0
    %v584 = vadd.f32 %v510, %v570
    %v585 = vadd.f32 %v511, %v572
    %v586 = vadd.f32 %v512, %v575
    %v587 = vadd.f32 %v513, %v577
    %v588 = vadd.f32 %v514, %v580
    %v589 = vadd.f32 %v515, %v582
    %v590 = vld [vmem:[%s0 + $0x8] sm:$0xc]
    %v591 = vld [vmem:[%s0 + $0xc] sm:$0xf]
    %v592 = vld [vmem:[%s0 + $0x10] sm:$0xf]
    %v593 = vld [vmem:[%s0 + $0x14] sm:$0xf]
    %v594 = vld [vmem:[%s0 + $0x18] sm:$0xf]
    %v595 = vld [vmem:[%s0 + $0x1c] sm:$0xf]
    %v596 = vld [vmem:[%s0 + $0x20] sm:$0x1]
    %s597 = scalar_lea.vmem [#allocation2], 64
    %v598 = vld [vmem:[%s597] sm:$0xf]
    %v599 = vld [vmem:[%s597 + $0x4] sm:$0xf]
    %v607 = vunpack.c.l.b16 %v590
    %v608 = vunpack.c.l.b16 %v591
    %v609 = vunpack.c.l.b16 %v592
    %v610 = vunpack.c.l.b16 %v593
    %v611 = vunpack.c.l.b16 %v594
    %v612 = vunpack.c.l.b16 %v595
    %v613 = vunpack.c.l.b16 %v596
    %v614 = vpack.c.b16 %v608, %v607
    %v615 = vpack.c.b16 %v610, %v609
    %v616 = vpack.c.b16 %v612, %v611
    %v617 = vpack.c.b16 %v613, %v613
    %vm618 = vcmask 1045504
    %v619 = vrot.slane %v614, 2
    %v620 = vrot.slane %v615, 2
    %v621 = vsel %vm618, %v619, %v620
    %v622 = vrot.slane %v616, 2
    %v623 = vsel %vm618, %v620, %v622
    %v624 = vrot.slane %v617, 2
    %v625 = vsel %vm618, %v622, %v624
    %v628 = vunpack.c.l.b16 %v598
    %v629 = vunpack.c.l.b16 %v599
    %v630 = vpack.c.b16 %v629, %v628
    %v633 = vsel %vm87, %v621, 0
    %v636 = vsel %vm87, %v623, 0
    %v639 = vsel %vm87, %v625, 0
    %641 = vmatpush.bf16.msra.mxu0 0
    %642 = vmatpush.bf16.msra.mxu0 0
    %643 = vmatpush.bf16.msra.mxu0 0
    %644 = vmatpush.bf16.msra.mxu0 0
    %645 = vmatpush.bf16.msra.mxu0 0
    %646 = vmatpush.bf16.msra.mxu0 0
    %647 = vmatpush.bf16.msra.mxu0 0
    %648 = vmatpush.bf16.msra.mxu0 %v630
    %649 = vmatmul.bf16.gmra.mxu0 %v633
    %v650 = vpop.f32.mrf.mxu0
    %v651 = vadd.f32 0.0, %v650
    %v652 = vpop.f32.mrf.mxu0
    %v653 = vadd.f32 0.0, %v652
    %654 = vmatmul.bf16.gmra.mxu0 %v636
    %v655 = vpop.f32.mrf.mxu0
    %v656 = vadd.f32 0.0, %v655
    %v657 = vpop.f32.mrf.mxu0
    %v658 = vadd.f32 0.0, %v657
    %659 = vmatmul.bf16.gmra.mxu0 %v639
    %v660 = vpop.f32.mrf.mxu0
    %v661 = vadd.f32 0.0, %v660
    %v662 = vpop.f32.mrf.mxu0
    %v663 = vadd.f32 0.0, %v662
    %664 = vdwg.mxu0
    %v665 = vadd.f32 %v584, %v651
    %v666 = vadd.f32 %v585, %v653
    %v667 = vadd.f32 %v586, %v656
    %v668 = vadd.f32 %v587, %v658
    %v669 = vadd.f32 %v588, %v661
    %v670 = vadd.f32 %v589, %v663
    %v671 = vld [vmem:[%s2] sm:$0x1]
    %v673 = vperm.slane %v671, 0
    %v675 = vadd.f32 %v665, %v673
    %v676 = vadd.f32 %v666, %v673
    %v677 = vadd.f32 %v667, %v673
    %v678 = vadd.f32 %v668, %v673
    %v679 = vadd.f32 %v669, %v673
    %v680 = vadd.f32 %v670, %v673
    %vm681 = vcmask 195584
    %682 = vst.msk [vmem:[%s3] sm:$0xff] %vm681, %v675
    %683 = vst.msk [vmem:[%s3 + $0x8] sm:$0xff] %vm681, %v676
    %684 = vst.msk [vmem:[%s3 + $0x10] sm:$0xff] %vm681, %v677
    %685 = vst.msk [vmem:[%s3 + $0x18] sm:$0xff] %vm681, %v678
    %686 = vst.msk [vmem:[%s3 + $0x20] sm:$0xff] %vm681, %v679
    %vm687 = vcmask 192512
    %688 = vst.msk [vmem:[%s3 + $0x28] sm:$0x1f] %vm687, %v680
    // Predicated region
    $region18: #{tpu_custom_call.1} parent=1 // pred_check
      _
    $region19: #{tpu_custom_call.1} parent=1 // pred_check_branch
      %690 = sbr.rel (0) target = $region21
    $region20: #{tpu_custom_call.1} parent=1 // pred_region
      _
    $region21: #{tpu_custom_call.1} parent=1 // pred_fallthru
      _
    // Predicated region
    $region22: #{tpu_custom_call.1} parent=1 // pred_check
      _
    $region23: #{tpu_custom_call.1} parent=1 // pred_check_branch
      %692 = sbr.rel (0) target = $region25
    $region24: #{tpu_custom_call.1} parent=1 // pred_region
      _
    $region25: #{tpu_custom_call.1} parent=1 // pred_fallthru
      _
    %693 = vsyncpa [#allocation3], 1

</llo_original>
